<compile_context>
chip_gen: v5e
topology: v5e:2x2
jax: 0.10.0
libtpu: 0.0.40
codegen_flags: <defaults>
</compile_context>

<pallas_src>
import functools
import math

import jax
import jax.numpy as jnp
from jax import lax
from jax.experimental import pallas as pl
from jax.experimental.pallas import tpu as pltpu


# ----------------------------- configuration -------------------------------
B = 2            # batch
L = 8            # win_size (time window length)
C_IN = 4         # input_c
D_MODEL = 32     # d_model  (branch1/branch2 dims, match_dimension='last')
C_OUT = 4        # output_c
GAIN = 0.02      # 'normal' embedding init std
TEMPERATURE = 1.0
PACK_WIDTH = 128  # lane-dense packed output width (>= D_MODEL + C_OUT)


# ------------------------------ memory matrix -------------------------------
def create_memory_matrix_sinusoid(N, Lwin):
    """mem_R[n, l] = cos(2*pi/L * n*l), mem_I[n, l] = sin(2*pi/L * n*l)."""
    n = jnp.arange(N, dtype=jnp.float32).reshape(-1, 1)
    l = jnp.arange(Lwin, dtype=jnp.float32).reshape(1, -1)
    grid = n * l
    mem_r = jnp.cos(2.0 * math.pi / Lwin * grid)
    mem_i = jnp.sin(2.0 * math.pi / Lwin * grid)
    return mem_r, mem_i


# -------------------------------- kernel ------------------------------------
def transformer_var_kernel(x_ref, w_ref, b_ref, memrt_ref, y_ref, attn_ref, *,
                           n_batch, win, d_model):
    """Single-step kernel over the flattened (B*L, C_in) input.

    x_ref    : (B*L, C_in)         flattened input
    w_ref    : (C_in, PACK_WIDTH)  [w2 | w_out | 0-pad] fused, lane-dense weight
    b_ref    : (1,   PACK_WIDTH)   [b2 | b_out | 0-pad] fused bias row
    memrt_ref: (L, D)              mem_R.T already divided by temperature
    y_ref    : (B*L, PACK_WIDTH)   packed [i_query | out | 0] slab (split in wrapper)
    attn_ref : (B, D, D)           softmax attention
    """
    # One MXU push produces both i_query and the fully fused output projection.
    # Bias add rides the (otherwise idle) VALU slots.
    y = jnp.dot(x_ref[...], w_ref[...],
                preferred_element_type=jnp.float32) + b_ref[...]
    y_ref[...] = y                                   # full 128-lane unmasked store

    i_q = y[:, :d_model]                             # (B*L, D) lane slice
    memrt = memrt_ref[...]                           # (L, D)

    # attn[b, f, j] = softmax_j( sum_l i_q[b, l, f] * mem_R[j, l] / T )
    # Contract over L with dot_general (trans-A form) — no explicit transpose.
    s_parts = []
    for b in range(n_batch):                         # static, tiny (B=2)
        iq_b = i_q[b * win:(b + 1) * win, :]         # (L, D) static slice
        s_parts.append(
            lax.dot_general(
                iq_b, memrt,
                dimension_numbers=(((0,), (0,)), ((), ())),
                preferred_element_type=jnp.float32))  # (D, D)
    s = jnp.stack(s_parts, axis=0)                   # (B, D, D)
    s = s - jnp.max(s, axis=-1, keepdims=True)
    p = jnp.exp(s)
    inv = pl.reciprocal(jnp.sum(p, axis=-1, keepdims=True), approx=False)
    attn_ref[...] = p * inv                          # single coalesced store


# --------------------- one-time parameter fusion (cold path) -----------------
def fuse_params(params, mem_r, temperature=TEMPERATURE, pack_width=PACK_WIDTH):
    """Precompute the fused, lane-dense kernel operands once (outside hot path).

    out = ((x@w1 + b1)@wp + bp)@wd + bd  ==  x @ w_out + b_out
    Packed weight columns: [0:D) = w2 (branch2), [D:D+Cout) = w_out, rest = 0.
    """
    D = params["w2"].shape[1]
    Cout = params["wp"].shape[1]
    Cin = params["w1"].shape[0]
    assert D + Cout <= pack_width

    w_out = params["w1"] @ params["wp"] @ params["wd"]                      # (Cin, Cout)
    b_out = (params["b1"] @ params["wp"] @ params["wd"]
             + params["bp"] @ params["wd"] + params["bd"])                  # (1, Cout)

    w = jnp.zeros((Cin, pack_width), jnp.float32)
    w = w.at[:, :D].set(params["w2"].astype(jnp.float32))
    w = w.at[:, D:D + Cout].set(w_out.astype(jnp.float32))

    b = jnp.zeros((1, pack_width), jnp.float32)
    b = b.at[:, :D].set(params["b2"].astype(jnp.float32))
    b = b.at[:, D:D + Cout].set(b_out.astype(jnp.float32))

    mem_t = mem_r.T.astype(jnp.float32)                                     # (L, D)
    memrt_scaled = mem_t * (1.0 / temperature)                              # fold temperature

    return {"w": w, "b": b, "memrt_scaled": memrt_scaled, "mem_t": mem_t,
            "d_model": D, "c_out": Cout}


# ------------------------------- hot-path forward ----------------------------
@functools.partial(jax.jit, static_argnames=("d_model", "c_out"))
def transformer_var_forward(x, w, b, memrt_scaled, mem_t, *, d_model, c_out):
    Bx, Lx, Cin = x.shape
    x_flat = x.reshape(Bx * Lx, Cin).astype(jnp.float32)

    kernel = functools.partial(
        transformer_var_kernel, n_batch=Bx, win=Lx, d_model=d_model)

    y, attn = pl.pallas_call(
        kernel,
        out_shape=(
            jax.ShapeDtypeStruct((Bx * Lx, PACK_WIDTH), jnp.float32),  # [queries|out|pad]
            jax.ShapeDtypeStruct((Bx, d_model, d_model), jnp.float32),  # attn
        ),
        # Whole-problem single step: full-array VMEM blocks, no grid.
        in_specs=[
            pl.BlockSpec(memory_space=pltpu.MemorySpace.VMEM),   # x_flat
            pl.BlockSpec(memory_space=pltpu.MemorySpace.VMEM),   # fused weight
            pl.BlockSpec(memory_space=pltpu.MemorySpace.VMEM),   # fused bias
            pl.BlockSpec(memory_space=pltpu.MemorySpace.VMEM),   # mem_R.T / T
        ],
        out_specs=(
            pl.BlockSpec(memory_space=pltpu.MemorySpace.VMEM),
            pl.BlockSpec(memory_space=pltpu.MemorySpace.VMEM),
        ),
    )(x_flat, w, b, memrt_scaled)

    queries = y[:, :d_model].reshape(Bx, Lx, d_model)
    out = y[:, d_model:d_model + c_out].reshape(Bx, Lx, c_out)
    return {"out": out, "queries": queries, "mem": mem_t, "attn": attn}


# --------------------------- reference (plain JAX) ---------------------------
def reference_forward(x, params, mem_r, temperature=TEMPERATURE):
    t_q = x @ params["w1"] + params["b1"]
    i_q = x @ params["w2"] + params["b2"]
    scores = jnp.einsum("blf,jl->bfj", i_q, mem_r) / temperature
    attn = jax.nn.softmax(scores, axis=-1)
    z = t_q @ params["wp"] + params["bp"]
    out = z @ params["wd"] + params["bd"]
    return {"out": out, "queries": i_q, "mem": mem_r.T, "attn": attn}


# --------------------------------- main --------------------------------------
if __name__ == "__main__":
    key = jax.random.PRNGKey(0)
    kx, k1, k2, kp, kd = jax.random.split(key, 5)

    x = jax.random.normal(kx, (B, L, C_IN), dtype=jnp.float32)

    # 'normal' init: weights ~ N(0, gain), biases = 0 (deterministic via PRNGKey).
    params = {
        "w1": GAIN * jax.random.normal(k1, (C_IN, D_MODEL), dtype=jnp.float32),
        "b1": jnp.zeros((1, D_MODEL), dtype=jnp.float32),
        "w2": GAIN * jax.random.normal(k2, (C_IN, D_MODEL), dtype=jnp.float32),
        "b2": jnp.zeros((1, D_MODEL), dtype=jnp.float32),
        "wp": GAIN * jax.random.normal(kp, (D_MODEL, C_OUT), dtype=jnp.float32),
        "bp": jnp.zeros((1, C_OUT), dtype=jnp.float32),
        "wd": GAIN * jax.random.normal(kd, (C_OUT, C_OUT), dtype=jnp.float32),
        "bd": jnp.zeros((1, C_OUT), dtype=jnp.float32),
    }

    mem_r, _mem_i = create_memory_matrix_sinusoid(D_MODEL, L)

    # One-time (cold-path) weight fusion; the hot path is a single jit around
    # the pallas_call plus trivial reshapes/slices.
    fused = jax.tree_util.tree_map(
        lambda v: jax.block_until_ready(v) if isinstance(v, jax.Array) else v,
        fuse_params(params, mem_r))

    result = transformer_var_forward(
        x, fused["w"], fused["b"], fused["memrt_scaled"], fused["mem_t"],
        d_model=fused["d_model"], c_out=fused["c_out"])
    jax.block_until_ready(result)

    ref = reference_forward(x, params, mem_r)
    # out/queries: exact up to fp32 reassociation from the one-time weight fusion.
    assert jnp.allclose(result["out"], ref["out"], atol=1e-5, rtol=1e-5), "out"
    assert jnp.allclose(result["queries"], ref["queries"], atol=1e-5, rtol=1e-5), "queries"
    # attn now uses the exact reciprocal for the softmax denominator.
    assert jnp.allclose(result["attn"], ref["attn"], atol=1e-5, rtol=1e-5), "attn"
    assert jnp.allclose(result["mem"], ref["mem"]), "mem"

    print("KERNEL_OK")
</pallas_src>

<mosaic_0001>
module attributes {stable_mosaic.version = 11 : i64} {
  func.func @transformer_var_kernel(%arg0: memref<16x4xf32, #tpu.memory_space<vmem>>, %arg1: memref<4x128xf32, #tpu.memory_space<vmem>>, %arg2: memref<1x128xf32, #tpu.memory_space<vmem>>, %arg3: memref<8x32xf32, #tpu.memory_space<vmem>>, %arg4: memref<16x128xf32, #tpu.memory_space<vmem>>, %arg5: memref<2x32x32xf32, #tpu.memory_space<vmem>>) attributes {dimension_semantics = [], scalar_prefetch = 0 : i64, scratch_operands = 0 : i64, tpu.core_type = #tpu.core_type<tc>} {
    %c0 = arith.constant 0 : index
    %c0_0 = arith.constant 0 : index
    %0 = vector.load %arg0[%c0, %c0_0] : memref<16x4xf32, #tpu.memory_space<vmem>>, vector<16x4xf32>
    %c0_1 = arith.constant 0 : index
    %c0_2 = arith.constant 0 : index
    %1 = vector.load %arg1[%c0_1, %c0_2] : memref<4x128xf32, #tpu.memory_space<vmem>>, vector<4x128xf32>
    %cst = arith.constant dense<0.000000e+00> : vector<16x128xf32>
    %2 = tpu.matmul %0, %1, %cst {dimension_numbers = #tpu.dot_dimension_numbers<[1], [0], [0], [1], [0, 0, 1, 1], [], []>} : vector<16x4xf32>, vector<4x128xf32>, vector<16x128xf32> -> vector<16x128xf32>
    %c0_3 = arith.constant 0 : index
    %c0_4 = arith.constant 0 : index
    %3 = vector.load %arg2[%c0_3, %c0_4] : memref<1x128xf32, #tpu.memory_space<vmem>>, vector<1x128xf32>
    %4 = vector.broadcast %3 : vector<1x128xf32> to vector<16x128xf32>
    %5 = arith.addf %2, %4 : vector<16x128xf32>
    %c0_5 = arith.constant 0 : index
    %c0_6 = arith.constant 0 : index
    %6 = vector.load %arg4[%c0_5, %c0_6] : memref<16x128xf32, #tpu.memory_space<vmem>>, vector<16x128xf32>
    tpu.vector_store %arg4[%c0_5, %c0_6], %5 {strides = array<i32>} : memref<16x128xf32, #tpu.memory_space<vmem>>, vector<16x128xf32>,
    %7 = vector.extract_strided_slice %5 {offsets = [0, 0], sizes = [16, 32], strides = [1, 1]} : vector<16x128xf32> to vector<16x32xf32>
    %c0_7 = arith.constant 0 : index
    %c0_8 = arith.constant 0 : index
    %8 = vector.load %arg3[%c0_7, %c0_8] : memref<8x32xf32, #tpu.memory_space<vmem>>, vector<8x32xf32>
    %9 = vector.extract_strided_slice %7 {offsets = [0, 0], sizes = [8, 32], strides = [1, 1]} : vector<16x32xf32> to vector<8x32xf32>
    %cst_9 = arith.constant dense<0.000000e+00> : vector<32x32xf32>
    %10 = tpu.matmul %9, %8, %cst_9 {dimension_numbers = #tpu.dot_dimension_numbers<[0], [0], [1], [1], [0, 1, 1, 1], [], []>} : vector<8x32xf32>, vector<8x32xf32>, vector<32x32xf32> -> vector<32x32xf32>
    %11 = vector.extract_strided_slice %7 {offsets = [8, 0], sizes = [8, 32], strides = [1, 1]} : vector<16x32xf32> to vector<8x32xf32>
    %cst_10 = arith.constant dense<0.000000e+00> : vector<32x32xf32>
    %12 = tpu.matmul %11, %8, %cst_10 {dimension_numbers = #tpu.dot_dimension_numbers<[0], [0], [1], [1], [0, 1, 1, 1], [], []>} : vector<8x32xf32>, vector<8x32xf32>, vector<32x32xf32> -> vector<32x32xf32>
    %13 = vector.shape_cast %10 : vector<32x32xf32> to vector<1x32x32xf32>
    %14 = vector.shape_cast %12 : vector<32x32xf32> to vector<1x32x32xf32>
    %15 = tpu.concatenate %13, %14 in 0 : vector<1x32x32xf32>, vector<1x32x32xf32> -> vector<2x32x32xf32>
    %cst_11 = arith.constant dense<0xFF800000> : vector<2x32xf32>
    %16 = vector.multi_reduction <maximumf>, %15, %cst_11 [2] : vector<2x32x32xf32> to vector<2x32xf32>
    %17 = vector.shape_cast %16 : vector<2x32xf32> to vector<2x32x1xf32>
    %18 = vector.broadcast %17 : vector<2x32x1xf32> to vector<2x32x32xf32>
    %19 = arith.subf %15, %18 : vector<2x32x32xf32>
    %20 = math.exp %19 : vector<2x32x32xf32>
    %cst_12 = arith.constant dense<0.000000e+00> : vector<2x32xf32>
    %21 = vector.multi_reduction <add>, %20, %cst_12 [2] : vector<2x32x32xf32> to vector<2x32xf32>
    %22 = vector.shape_cast %21 : vector<2x32xf32> to vector<2x32x1xf32>
    %23 = tpu.reciprocal %22 : vector<2x32x1xf32> -> vector<2x32x1xf32>
    %24 = vector.broadcast %23 : vector<2x32x1xf32> to vector<2x32x32xf32>
    %25 = arith.mulf %20, %24 : vector<2x32x32xf32>
    %c0_13 = arith.constant 0 : index
    %c0_14 = arith.constant 0 : index
    %c0_15 = arith.constant 0 : index
    %26 = vector.load %arg5[%c0_13, %c0_14, %c0_15] : memref<2x32x32xf32, #tpu.memory_space<vmem>>, vector<2x32x32xf32>
    tpu.vector_store %arg5[%c0_13, %c0_14, %c0_15], %25 {strides = array<i32>} : memref<2x32x32xf32, #tpu.memory_space<vmem>>, vector<2x32x32xf32>,
    return
  }
}

</mosaic_0001>

<llo_original>
// kernel: transformer_var_forward.1
$region0: #{transformer_var_forward.1}
  #allocation0 [shape = 'u32[]', space=smem, size = 0x4, offset = 0x4, fixed_abs, tag = 'smem constant byte address 0x4 - core index']
  #allocation1 [shape = 'u32[72,128]{1,0:T(1,128)}', space=vmem, size = 0x9000, scoped, tag = 'internal scratch']
  %s0 = inlined_call_operand.vmem [shape: f32[16,4], index: 0, kind: input, shape index: {}]
  %s1 = inlined_call_operand.vmem [shape: f32[4,128], index: 1, kind: input, shape index: {}]
  %s2 = inlined_call_operand.vmem [shape: f32[1,128], index: 2, kind: input, shape index: {}]
  %s3 = inlined_call_operand.vmem [shape: f32[8,32], index: 3, kind: input, shape index: {}]
  %s4 = inlined_call_operand.vmem [shape: f32[16,128], index: 4, kind: output, shape index: {0}]
  %s5 = inlined_call_operand.hbm [shape: f32[2,32,32], index: 5, kind: output, shape index: {1}]
  %6 = xla_tuple %s4, %s5
  %s7 = sld [smem:[#allocation0]]
  $region34: #{transformer_var_forward.1} parent=0
    _
  %s9 = ssub.s32 1, %s7
  %s10 = scalar_select 0, %s9, %s7
  $region1: #{transformer_var_forward.1} parent=0
    #allocation2 [shape = 'u8[32768]{0}', space=vmem, size = 0x8000, scoped, tag = 'output window, operand 1, single buffered']
    #allocation3 [shape = 's32[1]{0}', space=sflag, size = 0x4, scoped, tag = 'scoped memory for transformer_var_forward.1']
    %11 = vsyncpa [#allocation3], 0
    // Predicated region
    $region2: #{transformer_var_forward.1} parent=1 // pred_check
      _
    $region3: #{transformer_var_forward.1} parent=1 // pred_check_branch
      %13 = sbr.rel (0) target = $region5
    $region4: #{transformer_var_forward.1} parent=1 // pred_region
      _
    $region5: #{transformer_var_forward.1} parent=1 // pred_fallthru
      _
    // Predicated region
    $region6: #{transformer_var_forward.1} parent=1 // pred_check
      _
    $region7: #{transformer_var_forward.1} parent=1 // pred_check_branch
      %15 = sbr.rel (0) target = $region9
    $region8: #{transformer_var_forward.1} parent=1 // pred_region
      _
    $region9: #{transformer_var_forward.1} parent=1 // pred_fallthru
      _
    // Predicated region
    $region10: #{transformer_var_forward.1} parent=1 // pred_check
      _
    $region11: #{transformer_var_forward.1} parent=1 // pred_check_branch
      %17 = sbr.rel (0) target = $region13
    $region12: #{transformer_var_forward.1} parent=1 // pred_region
      _
    $region13: #{transformer_var_forward.1} parent=1 // pred_fallthru
      _
    // Predicated region
    $region14: #{transformer_var_forward.1} parent=1 // pred_check
      _
    $region15: #{transformer_var_forward.1} parent=1 // pred_check_branch
      %19 = sbr.rel (0) target = $region17
    $region16: #{transformer_var_forward.1} parent=1 // pred_region
      _
    $region17: #{transformer_var_forward.1} parent=1 // pred_fallthru
      _
    %v20 = vld [vmem:[%s0] sm:$0xff]
    %v21 = vld [vmem:[%s0 + $0x8] sm:$0xff]
    %v22 = vld [vmem:[%s1] sm:$0xf]
    %v23 = vld [vmem:[%s2] sm:$0x1]
    %v25 = vperm.slane %v23, 0
    %vm27 = vcmask 31744
    %v29 = vsel %vm27, %v20, 0
    %v32 = vsel %vm27, %v21, 0
    %vm34 = vcmask 1043456
    %v36 = vsel %vm34, %v22, 0
    %38 = vmatpush.msra.mxu0 0.0
    %39 = vmatpush.msra.mxu0 0.0
    %40 = vmatpush.msra.mxu0 0.0
    %41 = vmatpush.msra.mxu0 0.0
    %42 = vmatpush.msra.mxu0 0.0
    %43 = vmatpush.msra.mxu0 0.0
    %44 = vmatpush.msra.mxu0 0.0
    %45 = vmatpush.msra.mxu0 0.0
    %46 = vmatpush.msra.mxu0 0.0
    %47 = vmatpush.msra.mxu0 0.0
    %48 = vmatpush.msra.mxu0 0.0
    %49 = vmatpush.msra.mxu0 0.0
    %50 = vmatpush.msra.mxu0 0.0
    %51 = vmatpush.msra.mxu0 0.0
    %52 = vmatpush.msra.mxu0 0.0
    %53 = vmatpush.msra.mxu0 %v36
    %54 = vmatmul.f32.gmra.mxu0 %v29
    %v55 = vpop.f32.mrf.mxu0
    %v56 = vadd.f32 %v25, %v55
    %57 = vmatmul.f32.gmra.mxu0 %v32
    %v58 = vpop.f32.mrf.mxu0
    %v59 = vadd.f32 %v25, %v58
    %60 = vdwg.mxu0
    %61 = vst [vmem:[%s4] sm:$0xff] %v56
    %62 = vst [vmem:[%s4 + $0x8] sm:$0xff] %v59
    %v63 = vld [vmem:[%s3] sm:$0xff]
    %64 = vxpose.xlu0.b32.start [1/16] %v56, 128
    %65 = vxpose.xlu0.b32.cont [2/16] 0.0, 128
    %66 = vxpose.xlu0.b32.cont [3/16] 0.0, 128
    %67 = vxpose.xlu0.b32.cont [4/16] 0.0, 128
    %68 = vxpose.xlu0.b32.cont [5/16] 0.0, 128
    %69 = vxpose.xlu0.b32.cont [6/16] 0.0, 128
    %70 = vxpose.xlu0.b32.cont [7/16] 0.0, 128
    %71 = vxpose.xlu0.b32.cont [8/16] 0.0, 128
    %72 = vxpose.xlu0.b32.cont [9/16] 0.0, 128
    %73 = vxpose.xlu0.b32.cont [10/16] 0.0, 128
    %74 = vxpose.xlu0.b32.cont [11/16] 0.0, 128
    %75 = vxpose.xlu0.b32.cont [12/16] 0.0, 128
    %76 = vxpose.xlu0.b32.cont [13/16] 0.0, 128
    %77 = vxpose.xlu0.b32.cont [14/16] 0.0, 128
    %78 = vxpose.xlu0.b32.cont [15/16] 0.0, 128
    %79 = vxpose.xlu0.b32.end [16/16] 0.0, 128
    %v80 = vpop.trf.xlu0
    %v81 = vpop.trf.xlu0
    %v82 = vpop.trf.xlu0
    %v83 = vpop.trf.xlu0
    %v84 = vpop.trf.xlu0
    %v85 = vpop.trf.xlu0
    %v86 = vpop.trf.xlu0
    %v87 = vpop.trf.xlu0
    %v88 = vpop.trf.xlu0
    %v89 = vpop.trf.xlu0
    %v90 = vpop.trf.xlu0
    %v91 = vpop.trf.xlu0
    %v92 = vpop.trf.xlu0
    %v93 = vpop.trf.xlu0
    %v94 = vpop.trf.xlu0
    %v95 = vpop.trf.xlu0
    %vm96 = vcmask 64512
    %v98 = vsel %vm96, %v80, 0
    %v101 = vsel %vm96, %v81, 0
    %v104 = vsel %vm96, %v82, 0
    %v107 = vsel %vm96, %v83, 0
    %109 = vmatpush.msra.mxu0 0.0
    %110 = vmatpush.msra.mxu0 0.0
    %111 = vmatpush.msra.mxu0 0.0
    %112 = vmatpush.msra.mxu0 0.0
    %113 = vmatpush.msra.mxu0 0.0
    %114 = vmatpush.msra.mxu0 0.0
    %115 = vmatpush.msra.mxu0 0.0
    %116 = vmatpush.msra.mxu0 0.0
    %117 = vmatpush.msra.mxu0 0.0
    %118 = vmatpush.msra.mxu0 0.0
    %119 = vmatpush.msra.mxu0 0.0
    %120 = vmatpush.msra.mxu0 0.0
    %121 = vmatpush.msra.mxu0 0.0
    %122 = vmatpush.msra.mxu0 0.0
    %123 = vmatpush.msra.mxu0 0.0
    %124 = vmatpush.msra.mxu0 %v63
    %125 = vmatmul.f32.gmra.mxu0 %v98
    %v126 = vpop.f32.mrf.mxu0
    %v127 = vadd.f32 0.0, %v126
    %128 = vmatmul.f32.gmra.mxu0 %v101
    %v129 = vpop.f32.mrf.mxu0
    %v130 = vadd.f32 0.0, %v129
    %131 = vmatmul.f32.gmra.mxu0 %v104
    %v132 = vpop.f32.mrf.mxu0
    %v133 = vadd.f32 0.0, %v132
    %134 = vmatmul.f32.gmra.mxu0 %v107
    %v135 = vpop.f32.mrf.mxu0
    %v136 = vadd.f32 0.0, %v135
    %137 = vdwg.mxu0
    %138 = vxpose.xlu0.b32.start [1/16] %v59, 128
    %139 = vxpose.xlu0.b32.cont [2/16] 0.0, 128
    %140 = vxpose.xlu0.b32.cont [3/16] 0.0, 128
    %141 = vxpose.xlu0.b32.cont [4/16] 0.0, 128
    %142 = vxpose.xlu0.b32.cont [5/16] 0.0, 128
    %143 = vxpose.xlu0.b32.cont [6/16] 0.0, 128
    %144 = vxpose.xlu0.b32.cont [7/16] 0.0, 128
    %145 = vxpose.xlu0.b32.cont [8/16] 0.0, 128
    %146 = vxpose.xlu0.b32.cont [9/16] 0.0, 128
    %147 = vxpose.xlu0.b32.cont [10/16] 0.0, 128
    %148 = vxpose.xlu0.b32.cont [11/16] 0.0, 128
    %149 = vxpose.xlu0.b32.cont [12/16] 0.0, 128
    %150 = vxpose.xlu0.b32.cont [13/16] 0.0, 128
    %151 = vxpose.xlu0.b32.cont [14/16] 0.0, 128
    %152 = vxpose.xlu0.b32.cont [15/16] 0.0, 128
    %153 = vxpose.xlu0.b32.end [16/16] 0.0, 128
    %v154 = vpop.trf.xlu0
    %v155 = vpop.trf.xlu0
    %v156 = vpop.trf.xlu0
    %v157 = vpop.trf.xlu0
    %v158 = vpop.trf.xlu0
    %v159 = vpop.trf.xlu0
    %v160 = vpop.trf.xlu0
    %v161 = vpop.trf.xlu0
    %v162 = vpop.trf.xlu0
    %v163 = vpop.trf.xlu0
    %v164 = vpop.trf.xlu0
    %v165 = vpop.trf.xlu0
    %v166 = vpop.trf.xlu0
    %v167 = vpop.trf.xlu0
    %v168 = vpop.trf.xlu0
    %v169 = vpop.trf.xlu0
    %v171 = vsel %vm96, %v154, 0
    %v174 = vsel %vm96, %v155, 0
    %v177 = vsel %vm96, %v156, 0
    %v180 = vsel %vm96, %v157, 0
    %182 = vmatpush.msra.mxu0 0.0
    %183 = vmatpush.msra.mxu0 0.0
    %184 = vmatpush.msra.mxu0 0.0
    %185 = vmatpush.msra.mxu0 0.0
    %186 = vmatpush.msra.mxu0 0.0
    %187 = vmatpush.msra.mxu0 0.0
    %188 = vmatpush.msra.mxu0 0.0
    %189 = vmatpush.msra.mxu0 0.0
    %190 = vmatpush.msra.mxu0 0.0
    %191 = vmatpush.msra.mxu0 0.0
    %192 = vmatpush.msra.mxu0 0.0
    %193 = vmatpush.msra.mxu0 0.0
    %194 = vmatpush.msra.mxu0 0.0
    %195 = vmatpush.msra.mxu0 0.0
    %196 = vmatpush.msra.mxu0 0.0
    %197 = vmatpush.msra.mxu0 %v63
    %198 = vmatmul.f32.gmra.mxu0 %v171
    %v199 = vpop.f32.mrf.mxu0
    %v200 = vadd.f32 0.0, %v199
    %201 = vmatmul.f32.gmra.mxu0 %v174
    %v202 = vpop.f32.mrf.mxu0
    %v203 = vadd.f32 0.0, %v202
    %204 = vmatmul.f32.gmra.mxu0 %v177
    %v205 = vpop.f32.mrf.mxu0
    %v206 = vadd.f32 0.0, %v205
    %207 = vmatmul.f32.gmra.mxu0 %v180
    %v208 = vpop.f32.mrf.mxu0
    %v209 = vadd.f32 0.0, %v208
    %210 = vdwg.mxu0
    %vm211 = vcmask 261120
    %v212 = vsel %vm211, %v127, -inf
    %213 = vmax.xlane.f32.xlu0 %v212
    %v214 = vpop.xlane.xlu0 %213
    %v215 = vsel %vm211, %v130, -inf
    %216 = vmax.xlane.f32.xlu0 %v215
    %v217 = vpop.xlane.xlu0 %216
    %v218 = vsel %vm211, %v133, -inf
    %219 = vmax.xlane.f32.xlu0 %v218
    %v220 = vpop.xlane.xlu0 %219
    %v221 = vsel %vm211, %v136, -inf
    %222 = vmax.xlane.f32.xlu0 %v221
    %v223 = vpop.xlane.xlu0 %222
    %v224 = vsel %vm211, %v200, -inf
    %225 = vmax.xlane.f32.xlu0 %v224
    %v226 = vpop.xlane.xlu0 %225
    %v227 = vsel %vm211, %v203, -inf
    %228 = vmax.xlane.f32.xlu0 %v227
    %v229 = vpop.xlane.xlu0 %228
    %v230 = vsel %vm211, %v206, -inf
    %231 = vmax.xlane.f32.xlu0 %v230
    %v232 = vpop.xlane.xlu0 %231
    %v233 = vsel %vm211, %v209, -inf
    %234 = vmax.xlane.f32.xlu0 %v233
    %v235 = vpop.xlane.xlu0 %234
    %v236 = vsub.f32 %v127, %v214
    %v237 = vsub.f32 %v130, %v217
    %v238 = vsub.f32 %v133, %v220
    %v239 = vsub.f32 %v136, %v223
    %v240 = vsub.f32 %v200, %v226
    %v241 = vsub.f32 %v203, %v229
    %v242 = vsub.f32 %v206, %v232
    %v243 = vsub.f32 %v209, %v235
    %v244 = vmul.f32 %v236, 1.442695
    %v245 = vpow.pop %v244
    %v246 = vmul.f32 %v237, 1.442695
    %v247 = vpow.pop %v246
    %v248 = vmul.f32 %v238, 1.442695
    %v249 = vpow.pop %v248
    %v250 = vmul.f32 %v239, 1.442695
    %v251 = vpow.pop %v250
    %v252 = vmul.f32 %v240, 1.442695
    %v253 = vpow.pop %v252
    %v254 = vmul.f32 %v241, 1.442695
    %v255 = vpow.pop %v254
    %v256 = vmul.f32 %v242, 1.442695
    %v257 = vpow.pop %v256
    %v258 = vmul.f32 %v243, 1.442695
    %v259 = vpow.pop %v258
    %v260 = vsel %vm211, %v245, 0.0
    %261 = vadd.xlane.f32.xlu0 %v260
    %v262 = vpop.xlane.xlu0 %261
    %v263 = vsel %vm211, %v247, 0.0
    %264 = vadd.xlane.f32.xlu0 %v263
    %v265 = vpop.xlane.xlu0 %264
    %v266 = vsel %vm211, %v249, 0.0
    %267 = vadd.xlane.f32.xlu0 %v266
    %v268 = vpop.xlane.xlu0 %267
    %v269 = vsel %vm211, %v251, 0.0
    %270 = vadd.xlane.f32.xlu0 %v269
    %v271 = vpop.xlane.xlu0 %270
    %v272 = vsel %vm211, %v253, 0.0
    %273 = vadd.xlane.f32.xlu0 %v272
    %v274 = vpop.xlane.xlu0 %273
    %v275 = vsel %vm211, %v255, 0.0
    %276 = vadd.xlane.f32.xlu0 %v275
    %v277 = vpop.xlane.xlu0 %276
    %v278 = vsel %vm211, %v257, 0.0
    %279 = vadd.xlane.f32.xlu0 %v278
    %v280 = vpop.xlane.xlu0 %279
    %v281 = vsel %vm211, %v259, 0.0
    %282 = vadd.xlane.f32.xlu0 %v281
    %v283 = vpop.xlane.xlu0 %282
    %v284 = vrcp.pop %v262
    %v285 = vmul.f32 %v262, %v284
    %v286 = vsub.f32 1.0, %v285
    %v287 = vmul.f32 %v284, %v286
    %v288 = vadd.f32 %v284, %v287
    %vm289 = vweird.f32 %v262
    %vm290 = vweird.f32 %v284
    %vm291 = vmor %vm289, %vm290
    %v292 = vsel %vm291, %v284, %v288
    %v293 = vand.u32 2147483647, %v262
    %vm294 = vcmp.eq.f32.partialorder %v293, 8.507059e+37
    %v295 = vand.u32 %v262, 2147483648
    %v296 = vor.u32 1.1754944e-38, %v295
    %v297 = vsel %vm294, %v296, %v292
    %v298 = vrcp.pop %v265
    %v299 = vmul.f32 %v265, %v298
    %v300 = vsub.f32 1.0, %v299
    %v301 = vmul.f32 %v298, %v300
    %v302 = vadd.f32 %v298, %v301
    %vm303 = vweird.f32 %v265
    %vm304 = vweird.f32 %v298
    %vm305 = vmor %vm303, %vm304
    %v306 = vsel %vm305, %v298, %v302
    %v307 = vand.u32 2147483647, %v265
    %vm308 = vcmp.eq.f32.partialorder %v307, 8.507059e+37
    %v309 = vand.u32 %v265, 2147483648
    %v310 = vor.u32 1.1754944e-38, %v309
    %v311 = vsel %vm308, %v310, %v306
    %v312 = vrcp.pop %v268
    %v313 = vmul.f32 %v268, %v312
    %v314 = vsub.f32 1.0, %v313
    %v315 = vmul.f32 %v312, %v314
    %v316 = vadd.f32 %v312, %v315
    %vm317 = vweird.f32 %v268
    %vm318 = vweird.f32 %v312
    %vm319 = vmor %vm317, %vm318
    %v320 = vsel %vm319, %v312, %v316
    %v321 = vand.u32 2147483647, %v268
    %vm322 = vcmp.eq.f32.partialorder %v321, 8.507059e+37
    %v323 = vand.u32 %v268, 2147483648
    %v324 = vor.u32 1.1754944e-38, %v323
    %v325 = vsel %vm322, %v324, %v320
    %v326 = vrcp.pop %v271
    %v327 = vmul.f32 %v271, %v326
    %v328 = vsub.f32 1.0, %v327
    %v329 = vmul.f32 %v326, %v328
    %v330 = vadd.f32 %v326, %v329
    %vm331 = vweird.f32 %v271
    %vm332 = vweird.f32 %v326
    %vm333 = vmor %vm331, %vm332
    %v334 = vsel %vm333, %v326, %v330
    %v335 = vand.u32 2147483647, %v271
    %vm336 = vcmp.eq.f32.partialorder %v335, 8.507059e+37
    %v337 = vand.u32 %v271, 2147483648
    %v338 = vor.u32 1.1754944e-38, %v337
    %v339 = vsel %vm336, %v338, %v334
    %v340 = vrcp.pop %v274
    %v341 = vmul.f32 %v274, %v340
    %v342 = vsub.f32 1.0, %v341
    %v343 = vmul.f32 %v340, %v342
    %v344 = vadd.f32 %v340, %v343
    %vm345 = vweird.f32 %v274
    %vm346 = vweird.f32 %v340
    %vm347 = vmor %vm345, %vm346
    %v348 = vsel %vm347, %v340, %v344
    %v349 = vand.u32 2147483647, %v274
    %vm350 = vcmp.eq.f32.partialorder %v349, 8.507059e+37
    %v351 = vand.u32 %v274, 2147483648
    %v352 = vor.u32 1.1754944e-38, %v351
    %v353 = vsel %vm350, %v352, %v348
    %v354 = vrcp.pop %v277
    %v355 = vmul.f32 %v277, %v354
    %v356 = vsub.f32 1.0, %v355
    %v357 = vmul.f32 %v354, %v356
    %v358 = vadd.f32 %v354, %v357
    %vm359 = vweird.f32 %v277
    %vm360 = vweird.f32 %v354
    %vm361 = vmor %vm359, %vm360
    %v362 = vsel %vm361, %v354, %v358
    %v363 = vand.u32 2147483647, %v277
    %vm364 = vcmp.eq.f32.partialorder %v363, 8.507059e+37
    %v365 = vand.u32 %v277, 2147483648
    %v366 = vor.u32 1.1754944e-38, %v365
    %v367 = vsel %vm364, %v366, %v362
    %v368 = vrcp.pop %v280
    %v369 = vmul.f32 %v280, %v368
    %v370 = vsub.f32 1.0, %v369
    %v371 = vmul.f32 %v368, %v370
    %v372 = vadd.f32 %v368, %v371
    %vm373 = vweird.f32 %v280
    %vm374 = vweird.f32 %v368
    %vm375 = vmor %vm373, %vm374
    %v376 = vsel %vm375, %v368, %v372
    %v377 = vand.u32 2147483647, %v280
    %vm378 = vcmp.eq.f32.partialorder %v377, 8.507059e+37
    %v379 = vand.u32 %v280, 2147483648
    %v380 = vor.u32 1.1754944e-38, %v379
    %v381 = vsel %vm378, %v380, %v376
    %v382 = vrcp.pop %v283
    %v383 = vmul.f32 %v283, %v382
    %v384 = vsub.f32 1.0, %v383
    %v385 = vmul.f32 %v382, %v384
    %v386 = vadd.f32 %v382, %v385
    %vm387 = vweird.f32 %v283
    %vm388 = vweird.f32 %v382
    %vm389 = vmor %vm387, %vm388
    %v390 = vsel %vm389, %v382, %v386
    %v391 = vand.u32 2147483647, %v283
    %vm392 = vcmp.eq.f32.partialorder %v391, 8.507059e+37
    %v393 = vand.u32 %v283, 2147483648
    %v394 = vor.u32 1.1754944e-38, %v393
    %v395 = vsel %vm392, %v394, %v390
    %v396 = vmul.f32 %v245, %v297
    %v397 = vmul.f32 %v247, %v311
    %v398 = vmul.f32 %v249, %v325
    %v399 = vmul.f32 %v251, %v339
    %v400 = vmul.f32 %v253, %v353
    %v401 = vmul.f32 %v255, %v367
    %v402 = vmul.f32 %v257, %v381
    %v403 = vmul.f32 %v259, %v395
    %404 = vst.msk [vmem:[#allocation2] sm:$0xff] %vm211, %v396
    %405 = vst.msk [vmem:[#allocation2 + $0x8] sm:$0xff] %vm211, %v397
    %406 = vst.msk [vmem:[#allocation2 + $0x10] sm:$0xff] %vm211, %v398
    %407 = vst.msk [vmem:[#allocation2 + $0x18] sm:$0xff] %vm211, %v399
    %408 = vst.msk [vmem:[#allocation2 + $0x20] sm:$0xff] %vm211, %v400
    %409 = vst.msk [vmem:[#allocation2 + $0x28] sm:$0xff] %vm211, %v401
    %410 = vst.msk [vmem:[#allocation2 + $0x30] sm:$0xff] %vm211, %v402
    %411 = vst.msk [vmem:[#allocation2 + $0x38] sm:$0xff] %vm211, %v403
    // Predicated region
    $region18: #{transformer_var_forward.1} parent=1 // pred_check
      _
    $region19: #{transformer_var_forward.1} parent=1 // pred_check_branch
      %413 = sbr.rel (0) target = $region21
    $region20: #{transformer_var_forward.1} parent=1 // pred_region
      _
    $region21: #{transformer_var_forward.1} parent=1 // pred_fallthru
      _
    // Predicated region
    $region22: #{transformer_var_forward.1} parent=1 // pred_check
      _
    $region23: #{transformer_var_forward.1} parent=1 // pred_check_branch
      %415 = sbr.rel (0) target = $region25
    $region24: #{transformer_var_forward.1} parent=1 // pred_region
      %417 = vsyncadd [#allocation3], 0
      %s418 = sshll.u32 [#allocation2], 4
      %s419 = int_to_ptr.vmem [resolvable:$true] %s418
      %s420 = sshll.u32 %s5, 4
      %s421 = int_to_ptr.hbm [resolvable:$true] %s420
      %426 = dma.vmem_to_hbm [thread:$0]  %s419, 1024, %s421, [#allocation3], 128, 128, 8
    $region25: #{transformer_var_forward.1} parent=1 // pred_fallthru
      _
    // Predicated region
    $region26: #{transformer_var_forward.1} parent=1 // pred_check
      _
    $region27: #{transformer_var_forward.1} parent=1 // pred_check_branch
      %428 = sbr.rel (0) target = $region29
    $region28: #{transformer_var_forward.1} parent=1 // pred_region
      _
    $region29: #{transformer_var_forward.1} parent=1 // pred_fallthru
      _
    // Predicated region
    $region30: #{transformer_var_forward.1} parent=1 // pred_check
      _
    $region31: #{transformer_var_forward.1} parent=1 // pred_check_branch
      %430 = sbr.rel (0) target = $region33
    $region32: #{transformer_var_forward.1} parent=1 // pred_region
      %432 = dma.done [#allocation3], 1024
    $region33: #{transformer_var_forward.1} parent=1 // pred_fallthru
      _
    %433 = vsyncpa [#allocation3], 1

</llo_original>
